<compile_context>
chip_gen: v7x
topology: tpu7x:2x2x1
jax: 0.10.0
libtpu: 0.0.40
codegen_flags: <defaults>
</compile_context>

<pallas_src>
import jax
import jax.numpy as jnp
from jax import lax
from jax.experimental import pallas as pl
from jax.experimental.pallas import tpu as pltpu

# -------- model dims (from car_nn.__init__) --------
D_IN, D_HID, D_OUT = 5, 3, 1

CHUNK_ROWS = 32     # (32, 128) f32 = 4 vregs per feature slab inside the kernel
ROWS_MAX = 2048     # rows per grid step: 2048 * 128 = 262,144 samples (~5 MiB f32 x)


def _round_up(n, m):
    return ((n + m - 1) // m) * m


def car_nn_kernel(w1_ref, b1_ref, w2_ref, b2_ref, x_ref, o_ref):
    # x_ref: (D_IN, rows_tile, 128) VMEM (f32 or bf16); o_ref: (rows_tile, 128) f32.
    # Params are whole-array SMEM residents read once as scalars (broadcast on VPU).
    rows_tile = o_ref.shape[0]
    n_chunks = rows_tile // CHUNK_ROWS

    # Hoist all 22 scalar params out of the chunk loop (sregs).
    w1 = [[w1_ref[j, k] for k in range(D_IN)] for j in range(D_HID)]
    b1 = [b1_ref[j] for j in range(D_HID)]
    w2 = [w2_ref[0, j] for j in range(D_HID)]
    b2 = b2_ref[0]

    def chunk_body(c, carry):
        r0 = pl.multiple_of(c * CHUNK_ROWS, CHUNK_ROWS)
        # 5 dense (CHUNK_ROWS, 128) feature slabs, loaded once per chunk.
        xs = [x_ref[k, pl.ds(r0, CHUNK_ROWS), :].astype(jnp.float32)
              for k in range(D_IN)]
        y_acc = None
        for j in range(D_HID):
            h = w1[j][0] * xs[0]
            for k in range(1, D_IN):
                h = h + w1[j][k] * xs[k]
            h = jnp.tanh(h + b1[j])                         # EUP
            t = w2[j] * h
            y_acc = t if y_acc is None else y_acc + t
        o_ref[pl.ds(r0, CHUNK_ROWS), :] = jnp.tanh(y_acc + b2)  # dense (32,128) store
        return carry

    lax.fori_loop(0, n_chunks, chunk_body, 0)


def _tile_rows(R, rows_max):
    """Pick rows-per-step (multiple of CHUNK_ROWS) and number of grid steps."""
    steps = pl.cdiv(R, rows_max)
    if R >= 2 * CHUNK_ROWS:          # enough rows -> >=2 steps so v7x uses both TCs
        steps = max(steps, 2)
    rows_tile = _round_up(pl.cdiv(R, steps), CHUNK_ROWS)
    return rows_tile, steps, rows_tile * steps


def _car_nn_pallas(x_fm, w1, b1, w2, b2, rows_tile, steps):
    """x_fm: (D_IN, R_p, 128) with R_p == rows_tile * steps. Returns (R_p, 128) f32."""
    R_p = rows_tile * steps
    n = R_p * 128
    smem = pl.BlockSpec(memory_space=pltpu.MemorySpace.SMEM)
    cost = pl.CostEstimate(
        flops=2 * n * (D_IN * D_HID + D_HID * D_OUT),
        transcendentals=n * (D_HID + D_OUT),
        bytes_accessed=(x_fm.size * x_fm.dtype.itemsize + n * 4
                        + 4 * (D_IN * D_HID + D_HID + D_HID * D_OUT + D_OUT)),
    )
    return pl.pallas_call(
        car_nn_kernel,
        out_shape=jax.ShapeDtypeStruct((R_p, 128), jnp.float32),
        grid_spec=pltpu.PrefetchScalarGridSpec(
            num_scalar_prefetch=0,
            grid=(steps,),
            in_specs=[
                smem,                                               # w1 (3,5) SMEM
                smem,                                               # b1 (3,)  SMEM
                smem,                                               # w2 (1,3) SMEM
                smem,                                               # b2 (1,)  SMEM
                pl.BlockSpec((D_IN, rows_tile, 128), lambda i: (0, i, 0)),
            ],
            out_specs=pl.BlockSpec((rows_tile, 128), lambda i: (i, 0)),
        ),
        compiler_params=pltpu.CompilerParams(
            dimension_semantics=("parallel",),          # shard batch steps over TCs
            vmem_limit_bytes=32 * 1024 * 1024,
        ),
        cost_estimate=cost,
    )(w1.astype(jnp.float32), b1.astype(jnp.float32),
      w2.astype(jnp.float32), b2.astype(jnp.float32), x_fm)


def car_nn_forward_feature_major(x_fm, w1, b1, w2, b2, *, rows_max=ROWS_MAX):
    """Preferred entry: x_fm is (D_IN, R, 128), sample b at (row b//128, lane b%128).

    Skips the wrapper transpose entirely; pads rows only up to the tile multiple.
    Returns (R, 128) f32 in the same batch layout.
    """
    d, R, L = x_fm.shape
    assert d == D_IN and L == 128
    rows_tile, steps, R_p = _tile_rows(R, rows_max)
    if R_p != R:
        x_fm = jnp.zeros((D_IN, R_p, 128), x_fm.dtype).at[:, :R, :].set(x_fm)
    out = _car_nn_pallas(x_fm, w1, b1, w2, b2, rows_tile, steps)
    return out[:R]


def car_nn_forward(x, w1, b1, w2, b2, *, rows_max=ROWS_MAX):
    """PyTorch-layout entry: x is (B, 5); returns (B, 1) f32.

    Does one transpose + minimal zero-pad to reach the feature-major layout;
    producers that already hold feature-major activations should call
    car_nn_forward_feature_major and avoid this copy.
    """
    B = x.shape[0]
    R = pl.cdiv(max(B, 1), 128)
    rows_tile, steps, R_p = _tile_rows(R, rows_max)
    Bp = R_p * 128

    dt = jnp.bfloat16 if x.dtype == jnp.bfloat16 else jnp.float32
    xt = x.astype(dt).T                                   # (5, B)
    if Bp == B:
        x_fm = xt.reshape(D_IN, R_p, 128)
    else:
        x_fm = jnp.zeros((D_IN, Bp), dt).at[:, :B].set(xt).reshape(D_IN, R_p, 128)

    out = _car_nn_pallas(x_fm, w1, b1, w2, b2, rows_tile, steps)
    return out.reshape(Bp)[:B].reshape(B, 1)


def _init_params(key):
    # deterministic synthetic init matching nn.Linear shapes:
    # lin1.weight (3,5), lin1.bias (3,), lin2.weight (1,3), lin2.bias (1,)
    k1, k2, k3, k4 = jax.random.split(key, 4)
    w1 = jax.random.uniform(k1, (D_HID, D_IN), jnp.float32, -0.4, 0.4)
    b1 = jax.random.uniform(k2, (D_HID,), jnp.float32, -0.4, 0.4)
    w2 = jax.random.uniform(k3, (D_OUT, D_HID), jnp.float32, -0.5, 0.5)
    b2 = jax.random.uniform(k4, (D_OUT,), jnp.float32, -0.5, 0.5)
    return w1, b1, w2, b2


def _ref_forward(x, w1, b1, w2, b2):
    return jnp.tanh(jnp.tanh(x @ w1.T + b1) @ w2.T + b2)


if __name__ == "__main__":
    key = jax.random.PRNGKey(0)
    kx, kx2, kp = jax.random.split(key, 3)
    w1, b1, w2, b2 = _init_params(kp)

    # Small shape consistent with the module (batch=8 samples of 5 features).
    batch = 8
    x = jax.random.normal(kx, (batch, D_IN), jnp.float32)
    out = jax.block_until_ready(car_nn_forward(x, w1, b1, w2, b2))
    ref = _ref_forward(x, w1, b1, w2, b2)
    assert out.shape == (batch, D_OUT)
    assert jnp.allclose(out, ref, atol=1e-5, rtol=1e-5)

    # Second check exercising the multi-step grid + ragged-row padding path.
    batch2 = 8209                      # -> 2 grid steps of 64 rows each
    x2 = jax.random.normal(kx2, (batch2, D_IN), jnp.float32)
    out2 = jax.block_until_ready(car_nn_forward(x2, w1, b1, w2, b2))
    ref2 = _ref_forward(x2, w1, b1, w2, b2)
    assert out2.shape == (batch2, D_OUT)
    assert jnp.allclose(out2, ref2, atol=1e-5, rtol=1e-5)

    print("KERNEL_OK")
</pallas_src>

<mosaic_0001>
module attributes {stable_mosaic.version = 11 : i64} {
  func.func @car_nn_kernel(%arg0: i32, %arg1: memref<3x5xf32, #tpu.memory_space<smem>>, %arg2: memref<3xf32, #tpu.memory_space<smem>>, %arg3: memref<1x3xf32, #tpu.memory_space<smem>>, %arg4: memref<1xf32, #tpu.memory_space<smem>>, %arg5: memref<5x32x128xf32, #tpu.memory_space<vmem>>, %arg6: memref<32x128xf32, #tpu.memory_space<vmem>>) attributes {dimension_semantics = [#tpu.dimension_semantics<parallel>], iteration_bounds = array<i64: 1>, scalar_prefetch = 0 : i64, scratch_operands = 0 : i64, tpu.core_type = #tpu.core_type<tc>, window_params = [{transform_indices = @transform_0, window_bounds = array<i64: 3, 5>}, {transform_indices = @transform_1, window_bounds = array<i64: 3>}, {transform_indices = @transform_2, window_bounds = array<i64: 1, 3>}, {transform_indices = @transform_3, window_bounds = array<i64: 1>}, {transform_indices = @transform_4, window_bounds = array<i64: 5, 32, 128>}, {transform_indices = @transform_5, window_bounds = array<i64: 32, 128>}]} {
    %c0 = arith.constant 0 : index
    %c0_0 = arith.constant 0 : index
    %0 = memref.load %arg1[%c0, %c0_0] : memref<3x5xf32, #tpu.memory_space<smem>>
    %c0_1 = arith.constant 0 : index
    %c1 = arith.constant 1 : index
    %1 = memref.load %arg1[%c0_1, %c1] : memref<3x5xf32, #tpu.memory_space<smem>>
    %c0_2 = arith.constant 0 : index
    %c2 = arith.constant 2 : index
    %2 = memref.load %arg1[%c0_2, %c2] : memref<3x5xf32, #tpu.memory_space<smem>>
    %c0_3 = arith.constant 0 : index
    %c3 = arith.constant 3 : index
    %3 = memref.load %arg1[%c0_3, %c3] : memref<3x5xf32, #tpu.memory_space<smem>>
    %c0_4 = arith.constant 0 : index
    %c4 = arith.constant 4 : index
    %4 = memref.load %arg1[%c0_4, %c4] : memref<3x5xf32, #tpu.memory_space<smem>>
    %c1_5 = arith.constant 1 : index
    %c0_6 = arith.constant 0 : index
    %5 = memref.load %arg1[%c1_5, %c0_6] : memref<3x5xf32, #tpu.memory_space<smem>>
    %c1_7 = arith.constant 1 : index
    %c1_8 = arith.constant 1 : index
    %6 = memref.load %arg1[%c1_7, %c1_8] : memref<3x5xf32, #tpu.memory_space<smem>>
    %c1_9 = arith.constant 1 : index
    %c2_10 = arith.constant 2 : index
    %7 = memref.load %arg1[%c1_9, %c2_10] : memref<3x5xf32, #tpu.memory_space<smem>>
    %c1_11 = arith.constant 1 : index
    %c3_12 = arith.constant 3 : index
    %8 = memref.load %arg1[%c1_11, %c3_12] : memref<3x5xf32, #tpu.memory_space<smem>>
    %c1_13 = arith.constant 1 : index
    %c4_14 = arith.constant 4 : index
    %9 = memref.load %arg1[%c1_13, %c4_14] : memref<3x5xf32, #tpu.memory_space<smem>>
    %c2_15 = arith.constant 2 : index
    %c0_16 = arith.constant 0 : index
    %10 = memref.load %arg1[%c2_15, %c0_16] : memref<3x5xf32, #tpu.memory_space<smem>>
    %c2_17 = arith.constant 2 : index
    %c1_18 = arith.constant 1 : index
    %11 = memref.load %arg1[%c2_17, %c1_18] : memref<3x5xf32, #tpu.memory_space<smem>>
    %c2_19 = arith.constant 2 : index
    %c2_20 = arith.constant 2 : index
    %12 = memref.load %arg1[%c2_19, %c2_20] : memref<3x5xf32, #tpu.memory_space<smem>>
    %c2_21 = arith.constant 2 : index
    %c3_22 = arith.constant 3 : index
    %13 = memref.load %arg1[%c2_21, %c3_22] : memref<3x5xf32, #tpu.memory_space<smem>>
    %c2_23 = arith.constant 2 : index
    %c4_24 = arith.constant 4 : index
    %14 = memref.load %arg1[%c2_23, %c4_24] : memref<3x5xf32, #tpu.memory_space<smem>>
    %c0_25 = arith.constant 0 : index
    %15 = memref.load %arg2[%c0_25] : memref<3xf32, #tpu.memory_space<smem>>
    %c1_26 = arith.constant 1 : index
    %16 = memref.load %arg2[%c1_26] : memref<3xf32, #tpu.memory_space<smem>>
    %c2_27 = arith.constant 2 : index
    %17 = memref.load %arg2[%c2_27] : memref<3xf32, #tpu.memory_space<smem>>
    %c0_28 = arith.constant 0 : index
    %c0_29 = arith.constant 0 : index
    %18 = memref.load %arg3[%c0_28, %c0_29] : memref<1x3xf32, #tpu.memory_space<smem>>
    %c0_30 = arith.constant 0 : index
    %c1_31 = arith.constant 1 : index
    %19 = memref.load %arg3[%c0_30, %c1_31] : memref<1x3xf32, #tpu.memory_space<smem>>
    %c0_32 = arith.constant 0 : index
    %c2_33 = arith.constant 2 : index
    %20 = memref.load %arg3[%c0_32, %c2_33] : memref<1x3xf32, #tpu.memory_space<smem>>
    %c0_34 = arith.constant 0 : index
    %21 = memref.load %arg4[%c0_34] : memref<1xf32, #tpu.memory_space<smem>>
    %c0_i32 = arith.constant 0 : i32
    %c32_i32 = arith.constant 32 : i32
    %22 = arith.muli %c0_i32, %c32_i32 : i32
    %23 = tpu.assume_multiple %22, 32 : i32
    %c0_35 = arith.constant 0 : index
    %24 = arith.index_cast %23 : i32 to index
    %c0_36 = arith.constant 0 : index
    %25 = vector.load %arg5[%c0_35, %24, %c0_36] : memref<5x32x128xf32, #tpu.memory_space<vmem>>, vector<1x32x128xf32>
    %26 = vector.shape_cast %25 : vector<1x32x128xf32> to vector<32x128xf32>
    %c1_37 = arith.constant 1 : index
    %27 = arith.index_cast %23 : i32 to index
    %c0_38 = arith.constant 0 : index
    %28 = vector.load %arg5[%c1_37, %27, %c0_38] : memref<5x32x128xf32, #tpu.memory_space<vmem>>, vector<1x32x128xf32>
    %29 = vector.shape_cast %28 : vector<1x32x128xf32> to vector<32x128xf32>
    %c2_39 = arith.constant 2 : index
    %30 = arith.index_cast %23 : i32 to index
    %c0_40 = arith.constant 0 : index
    %31 = vector.load %arg5[%c2_39, %30, %c0_40] : memref<5x32x128xf32, #tpu.memory_space<vmem>>, vector<1x32x128xf32>
    %32 = vector.shape_cast %31 : vector<1x32x128xf32> to vector<32x128xf32>
    %c3_41 = arith.constant 3 : index
    %33 = arith.index_cast %23 : i32 to index
    %c0_42 = arith.constant 0 : index
    %34 = vector.load %arg5[%c3_41, %33, %c0_42] : memref<5x32x128xf32, #tpu.memory_space<vmem>>, vector<1x32x128xf32>
    %35 = vector.shape_cast %34 : vector<1x32x128xf32> to vector<32x128xf32>
    %c4_43 = arith.constant 4 : index
    %36 = arith.index_cast %23 : i32 to index
    %c0_44 = arith.constant 0 : index
    %37 = vector.load %arg5[%c4_43, %36, %c0_44] : memref<5x32x128xf32, #tpu.memory_space<vmem>>, vector<1x32x128xf32>
    %38 = vector.shape_cast %37 : vector<1x32x128xf32> to vector<32x128xf32>
    %39 = vector.broadcast %0 : f32 to vector<32x128xf32>
    %40 = arith.mulf %39, %26 : vector<32x128xf32>
    %41 = vector.broadcast %1 : f32 to vector<32x128xf32>
    %42 = arith.mulf %41, %29 : vector<32x128xf32>
    %43 = arith.addf %40, %42 : vector<32x128xf32>
    %44 = vector.broadcast %2 : f32 to vector<32x128xf32>
    %45 = arith.mulf %44, %32 : vector<32x128xf32>
    %46 = arith.addf %43, %45 : vector<32x128xf32>
    %47 = vector.broadcast %3 : f32 to vector<32x128xf32>
    %48 = arith.mulf %47, %35 : vector<32x128xf32>
    %49 = arith.addf %46, %48 : vector<32x128xf32>
    %50 = vector.broadcast %4 : f32 to vector<32x128xf32>
    %51 = arith.mulf %50, %38 : vector<32x128xf32>
    %52 = arith.addf %49, %51 : vector<32x128xf32>
    %53 = vector.broadcast %15 : f32 to vector<32x128xf32>
    %54 = arith.addf %52, %53 : vector<32x128xf32>
    %55 = math.tanh %54 : vector<32x128xf32>
    %56 = vector.broadcast %18 : f32 to vector<32x128xf32>
    %57 = arith.mulf %56, %55 : vector<32x128xf32>
    %58 = vector.broadcast %5 : f32 to vector<32x128xf32>
    %59 = arith.mulf %58, %26 : vector<32x128xf32>
    %60 = vector.broadcast %6 : f32 to vector<32x128xf32>
    %61 = arith.mulf %60, %29 : vector<32x128xf32>
    %62 = arith.addf %59, %61 : vector<32x128xf32>
    %63 = vector.broadcast %7 : f32 to vector<32x128xf32>
    %64 = arith.mulf %63, %32 : vector<32x128xf32>
    %65 = arith.addf %62, %64 : vector<32x128xf32>
    %66 = vector.broadcast %8 : f32 to vector<32x128xf32>
    %67 = arith.mulf %66, %35 : vector<32x128xf32>
    %68 = arith.addf %65, %67 : vector<32x128xf32>
    %69 = vector.broadcast %9 : f32 to vector<32x128xf32>
    %70 = arith.mulf %69, %38 : vector<32x128xf32>
    %71 = arith.addf %68, %70 : vector<32x128xf32>
    %72 = vector.broadcast %16 : f32 to vector<32x128xf32>
    %73 = arith.addf %71, %72 : vector<32x128xf32>
    %74 = math.tanh %73 : vector<32x128xf32>
    %75 = vector.broadcast %19 : f32 to vector<32x128xf32>
    %76 = arith.mulf %75, %74 : vector<32x128xf32>
    %77 = arith.addf %57, %76 : vector<32x128xf32>
    %78 = vector.broadcast %10 : f32 to vector<32x128xf32>
    %79 = arith.mulf %78, %26 : vector<32x128xf32>
    %80 = vector.broadcast %11 : f32 to vector<32x128xf32>
    %81 = arith.mulf %80, %29 : vector<32x128xf32>
    %82 = arith.addf %79, %81 : vector<32x128xf32>
    %83 = vector.broadcast %12 : f32 to vector<32x128xf32>
    %84 = arith.mulf %83, %32 : vector<32x128xf32>
    %85 = arith.addf %82, %84 : vector<32x128xf32>
    %86 = vector.broadcast %13 : f32 to vector<32x128xf32>
    %87 = arith.mulf %86, %35 : vector<32x128xf32>
    %88 = arith.addf %85, %87 : vector<32x128xf32>
    %89 = vector.broadcast %14 : f32 to vector<32x128xf32>
    %90 = arith.mulf %89, %38 : vector<32x128xf32>
    %91 = arith.addf %88, %90 : vector<32x128xf32>
    %92 = vector.broadcast %17 : f32 to vector<32x128xf32>
    %93 = arith.addf %91, %92 : vector<32x128xf32>
    %94 = math.tanh %93 : vector<32x128xf32>
    %95 = vector.broadcast %20 : f32 to vector<32x128xf32>
    %96 = arith.mulf %95, %94 : vector<32x128xf32>
    %97 = arith.addf %77, %96 : vector<32x128xf32>
    %98 = vector.broadcast %21 : f32 to vector<32x128xf32>
    %99 = arith.addf %97, %98 : vector<32x128xf32>
    %100 = math.tanh %99 : vector<32x128xf32>
    %101 = arith.index_cast %23 : i32 to index
    %c0_45 = arith.constant 0 : index
    %102 = vector.load %arg6[%101, %c0_45] : memref<32x128xf32, #tpu.memory_space<vmem>>, vector<32x128xf32>
    tpu.vector_store %arg6[%101, %c0_45], %100 {strides = array<i32>} : memref<32x128xf32, #tpu.memory_space<vmem>>, vector<32x128xf32>,
    %c1_i32 = arith.constant 1 : i32
    return
  }
  func.func @transform_0(%arg0: i32) -> (i32, i32) {
    %c0_i32 = arith.constant 0 : i32
    %c0_i32_0 = arith.constant 0 : i32
    %c0_i32_1 = arith.constant 0 : i32
    return %c0_i32, %c0_i32_0 : i32, i32
  }
  func.func @transform_1(%arg0: i32) -> i32 {
    %c0_i32 = arith.constant 0 : i32
    %c0_i32_0 = arith.constant 0 : i32
    return %c0_i32 : i32
  }
  func.func @transform_2(%arg0: i32) -> (i32, i32) {
    %c0_i32 = arith.constant 0 : i32
    %c0_i32_0 = arith.constant 0 : i32
    %c0_i32_1 = arith.constant 0 : i32
    return %c0_i32, %c0_i32_0 : i32, i32
  }
  func.func @transform_3(%arg0: i32) -> i32 {
    %c0_i32 = arith.constant 0 : i32
    %c0_i32_0 = arith.constant 0 : i32
    return %c0_i32 : i32
  }
  func.func @transform_4(%arg0: i32) -> (i32, i32, i32) {
    %c0_i32 = arith.constant 0 : i32
    %c0_i32_0 = arith.constant 0 : i32
    %c0_i32_1 = arith.constant 0 : i32
    return %c0_i32, %arg0, %c0_i32_0 : i32, i32, i32
  }
  func.func @transform_5(%arg0: i32) -> (i32, i32) {
    %c0_i32 = arith.constant 0 : i32
    %c0_i32_0 = arith.constant 0 : i32
    return %arg0, %c0_i32 : i32, i32
  }
}

</mosaic_0001>

<llo_original>
// kernel: tpu_custom_call.1
$region0: #{tpu_custom_call.1}
  #allocation0 [shape = 'u32[]', space=smem, size = 0x4, offset = 0x4, fixed_abs, tag = 'smem constant byte address 0x4 - core index']
  #allocation1 [shape = 'u32[144,128]{1,0:T(1,128)}', space=vmem, size = 0x12000, scoped, tag = 'internal scratch']
  #allocation2 [shape = 'f32[1]{0:T(128)S(6)}', space=smem, size = 0x200, scoped, tag = 'scoped memory for tpu_custom_call.1']
  %s0 = inlined_call_operand.hbm [shape: f32[3,5], index: 0, kind: input, shape index: {}]
  %s1 = inlined_call_operand.vmem [shape: f32[3], index: 1, kind: input, shape index: {}]
  %s2 = inlined_call_operand.vmem [shape: f32[1,3], index: 2, kind: input, shape index: {}]
  %s3 = inlined_call_operand.<no memory space> [shape: f32[1], index: 3, kind: input, shape index: {}]
  %s4 = inlined_call_operand.hbm [shape: f32[5,32,128], index: 4, kind: input, shape index: {}]
  %s5 = inlined_call_operand.hbm [shape: f32[32,128], index: 5, kind: output, shape index: {}]
  %s6 = sld [smem:[#allocation0]]
  $region46: #{tpu_custom_call.1} parent=0
    _
  %s8 = ssub.s32 1, %s6
  %s9 = scalar_select 0, %s8, %s6
  %10 = sst [smem:[#allocation2]] %s3
  $region1: #{tpu_custom_call.1} parent=0
    #allocation3 [shape = 'u8[2048]{0}', space=smem, size = 0x800, scoped, tag = 'input window, operand 0, single buffered']
    #allocation4 [shape = 's32[1]{0}', space=sflag, size = 0x4, scoped, tag = 'scoped memory for tpu_custom_call.1']
    #allocation5 [shape = 's32[1]{0}', space=sflag, size = 0x4, scoped, tag = 'scoped memory for tpu_custom_call.1']
    #allocation6 [shape = 's32[1]{0}', space=sflag, size = 0x4, scoped, tag = 'scoped memory for tpu_custom_call.1']
    #allocation7 [shape = 's32[1]{0}', space=sflag, size = 0x4, scoped, tag = 'scoped memory for tpu_custom_call.1']
    #allocation8 [shape = 'u8[512]{0}', space=smem, size = 0x200, scoped, tag = 'input window, operand 1, single buffered']
    #allocation9 [shape = 'u8[512]{0}', space=smem, size = 0x200, scoped, tag = 'input window, operand 2, single buffered']
    #allocation10 [shape = 's32[1]{0}', space=sflag, size = 0x4, scoped, tag = 'scoped memory for tpu_custom_call.1']
    #allocation11 [shape = 'u8[81920]{0}', space=vmem, size = 0x14000, scoped, tag = 'input window, operand 4, single buffered']
    #allocation12 [shape = 'u8[16384]{0}', space=vmem, size = 0x4000, scoped, tag = 'output window, operand 0, single buffered']
    %11 = vsyncpa [#allocation6], 0
    %12 = vsyncpa [#allocation7], 0
    %13 = vsyncpa [#allocation10], 0
    %14 = vsyncpa [#allocation4], 0
    %15 = vsyncpa [#allocation5], 0
    // Predicated region
    $region2: #{tpu_custom_call.1} parent=1 // pred_check
      _
    $region3: #{tpu_custom_call.1} parent=1 // pred_check_branch
      %17 = sbr.rel (0) target = $region5
    $region4: #{tpu_custom_call.1} parent=1 // pred_region
      %s19 = ssub.s32 64, 64
      %20 = vsyncadd [#allocation6], %s19
      %23 = dma.hbm_to_smem %s0, 64, [#allocation3], [#allocation6]
    $region5: #{tpu_custom_call.1} parent=1 // pred_fallthru
      _
    // Predicated region
    $region6: #{tpu_custom_call.1} parent=1 // pred_check
      _
    $region7: #{tpu_custom_call.1} parent=1 // pred_check_branch
      %25 = sbr.rel (0) target = $region9
    $region8: #{tpu_custom_call.1} parent=1 // pred_region
      %s27 = ssub.s32 16, 16
      %28 = vsyncadd [#allocation7], %s27
      %s30 = sshll.u32 %s1, 4
      %s31 = int_to_ptr.vmem [resolvable:$true] %s30
      %33 = dma.vmem_to_smem %s31, 16, [#allocation8], [#allocation7]
    $region9: #{tpu_custom_call.1} parent=1 // pred_fallthru
      _
    // Predicated region
    $region10: #{tpu_custom_call.1} parent=1 // pred_check
      _
    $region11: #{tpu_custom_call.1} parent=1 // pred_check_branch
      %35 = sbr.rel (0) target = $region13
    $region12: #{tpu_custom_call.1} parent=1 // pred_region
      %s37 = ssub.s32 16, 16
      %38 = vsyncadd [#allocation10], %s37
      %s40 = sshll.u32 %s2, 4
      %s41 = int_to_ptr.vmem [resolvable:$true] %s40
      %43 = dma.vmem_to_smem %s41, 16, [#allocation9], [#allocation10]
    $region13: #{tpu_custom_call.1} parent=1 // pred_fallthru
      _
    // Predicated region
    $region14: #{tpu_custom_call.1} parent=1 // pred_check
      _
    $region15: #{tpu_custom_call.1} parent=1 // pred_check_branch
      %45 = sbr.rel (0) target = $region17
    $region16: #{tpu_custom_call.1} parent=1 // pred_region
      _
    $region17: #{tpu_custom_call.1} parent=1 // pred_fallthru
      _
    // Predicated region
    $region18: #{tpu_custom_call.1} parent=1 // pred_check
      _
    $region19: #{tpu_custom_call.1} parent=1 // pred_check_branch
      %47 = sbr.rel (0) target = $region21
    $region20: #{tpu_custom_call.1} parent=1 // pred_region
      %s49 = ssub.s32 2560, 2560
      %50 = vsyncadd [#allocation4], %s49
      %s51 = sshll.u32 [#allocation11], 4
      %s52 = int_to_ptr.vmem [resolvable:$true] %s51
      %57 = dma.hbm_to_vmem [thread:$0]  %s4, 2560, %s52, [#allocation4], 128, 128, 8
    $region21: #{tpu_custom_call.1} parent=1 // pred_fallthru
      _
    // Predicated region
    $region22: #{tpu_custom_call.1} parent=1 // pred_check
      _
    $region23: #{tpu_custom_call.1} parent=1 // pred_check_branch
      %59 = sbr.rel (0) target = $region25
    $region24: #{tpu_custom_call.1} parent=1 // pred_region
      %60 = dma.done [#allocation6], 64
    $region25: #{tpu_custom_call.1} parent=1 // pred_fallthru
      _
    // Predicated region
    $region26: #{tpu_custom_call.1} parent=1 // pred_check
      _
    $region27: #{tpu_custom_call.1} parent=1 // pred_check_branch
      %62 = sbr.rel (0) target = $region29
    $region28: #{tpu_custom_call.1} parent=1 // pred_region
      %63 = dma.done [#allocation7], 16
    $region29: #{tpu_custom_call.1} parent=1 // pred_fallthru
      _
    // Predicated region
    $region30: #{tpu_custom_call.1} parent=1 // pred_check
      _
    $region31: #{tpu_custom_call.1} parent=1 // pred_check_branch
      %65 = sbr.rel (0) target = $region33
    $region32: #{tpu_custom_call.1} parent=1 // pred_region
      %66 = dma.done [#allocation10], 16
    $region33: #{tpu_custom_call.1} parent=1 // pred_fallthru
      _
    // Predicated region
    $region34: #{tpu_custom_call.1} parent=1 // pred_check
      _
    $region35: #{tpu_custom_call.1} parent=1 // pred_check_branch
      %68 = sbr.rel (0) target = $region37
    $region36: #{tpu_custom_call.1} parent=1 // pred_region
      %69 = dma.done [#allocation4], 2560
    $region37: #{tpu_custom_call.1} parent=1 // pred_fallthru
      _
    %70 = sfence
    %s71 = sld [smem:[#allocation3]]
    %s72 = sld [smem:[#allocation3 + $0x1]]
    %s73 = sld [smem:[#allocation3 + $0x2]]
    %s74 = sld [smem:[#allocation3 + $0x3]]
    %s75 = sld [smem:[#allocation3 + $0x4]]
    %s76 = sld [smem:[#allocation3 + $0x80]]
    %s77 = sld [smem:[#allocation3 + $0x81]]
    %s78 = sld [smem:[#allocation3 + $0x82]]
    %s79 = sld [smem:[#allocation3 + $0x83]]
    %s80 = sld [smem:[#allocation3 + $0x84]]
    %s81 = sld [smem:[#allocation3 + $0x100]]
    %s82 = sld [smem:[#allocation3 + $0x101]]
    %s83 = sld [smem:[#allocation3 + $0x102]]
    %s84 = sld [smem:[#allocation3 + $0x103]]
    %s85 = sld [smem:[#allocation3 + $0x104]]
    %s86 = sld [smem:[#allocation8]]
    %s87 = sld [smem:[#allocation8 + $0x1]]
    %s88 = sld [smem:[#allocation8 + $0x2]]
    %s89 = sld [smem:[#allocation9]]
    %s90 = sld [smem:[#allocation9 + $0x1]]
    %s91 = sld [smem:[#allocation9 + $0x2]]
    %s92 = sld [smem:[#allocation2]]
    %v93 = vld [vmem:[#allocation11] sm:$0xff]
    %v94 = vld [vmem:[#allocation11 + $0x8] sm:$0xff]
    %v95 = vld [vmem:[#allocation11 + $0x10] sm:$0xff]
    %v96 = vld [vmem:[#allocation11 + $0x18] sm:$0xff]
    %s97 = sadd.s32 0, 32
    %s98 = scalar_lea.vmem [#allocation11], %s97
    %v99 = vld [vmem:[%s98] sm:$0xff]
    %v100 = vld [vmem:[%s98 + $0x8] sm:$0xff]
    %v101 = vld [vmem:[%s98 + $0x10] sm:$0xff]
    %v102 = vld [vmem:[%s98 + $0x18] sm:$0xff]
    %s103 = sadd.s32 0, 64
    %s104 = scalar_lea.vmem [#allocation11], %s103
    %v105 = vld [vmem:[%s104] sm:$0xff]
    %v106 = vld [vmem:[%s104 + $0x8] sm:$0xff]
    %v107 = vld [vmem:[%s104 + $0x10] sm:$0xff]
    %v108 = vld [vmem:[%s104 + $0x18] sm:$0xff]
    %s109 = sadd.s32 0, 96
    %s110 = scalar_lea.vmem [#allocation11], %s109
    %v111 = vld [vmem:[%s110] sm:$0xff]
    %v112 = vld [vmem:[%s110 + $0x8] sm:$0xff]
    %v113 = vld [vmem:[%s110 + $0x10] sm:$0xff]
    %v114 = vld [vmem:[%s110 + $0x18] sm:$0xff]
    %s115 = sadd.s32 0, 128
    %s116 = scalar_lea.vmem [#allocation11], %s115
    %v117 = vld [vmem:[%s116] sm:$0xff]
    %v118 = vld [vmem:[%s116 + $0x8] sm:$0xff]
    %v119 = vld [vmem:[%s116 + $0x10] sm:$0xff]
    %v120 = vld [vmem:[%s116 + $0x18] sm:$0xff]
    %v121 = vstv %s71
    %v122 = vmul.f32 %v121, %v93
    %v123 = vmul.f32 %v121, %v94
    %v124 = vmul.f32 %v121, %v95
    %v125 = vmul.f32 %v121, %v96
    %v126 = vstv %s72
    %v127 = vmul.f32 %v126, %v99
    %v128 = vmul.f32 %v126, %v100
    %v129 = vmul.f32 %v126, %v101
    %v130 = vmul.f32 %v126, %v102
    %v131 = vadd.f32 %v122, %v127
    %v132 = vadd.f32 %v123, %v128
    %v133 = vadd.f32 %v124, %v129
    %v134 = vadd.f32 %v125, %v130
    %v135 = vstv %s73
    %v136 = vmul.f32 %v135, %v105
    %v137 = vmul.f32 %v135, %v106
    %v138 = vmul.f32 %v135, %v107
    %v139 = vmul.f32 %v135, %v108
    %v140 = vadd.f32 %v131, %v136
    %v141 = vadd.f32 %v132, %v137
    %v142 = vadd.f32 %v133, %v138
    %v143 = vadd.f32 %v134, %v139
    %v144 = vstv %s74
    %v145 = vmul.f32 %v144, %v111
    %v146 = vmul.f32 %v144, %v112
    %v147 = vmul.f32 %v144, %v113
    %v148 = vmul.f32 %v144, %v114
    %v149 = vadd.f32 %v140, %v145
    %v150 = vadd.f32 %v141, %v146
    %v151 = vadd.f32 %v142, %v147
    %v152 = vadd.f32 %v143, %v148
    %v153 = vstv %s75
    %v154 = vmul.f32 %v153, %v117
    %v155 = vmul.f32 %v153, %v118
    %v156 = vmul.f32 %v153, %v119
    %v157 = vmul.f32 %v153, %v120
    %v158 = vadd.f32 %v149, %v154
    %v159 = vadd.f32 %v150, %v155
    %v160 = vadd.f32 %v151, %v156
    %v161 = vadd.f32 %v152, %v157
    %v162 = vstv %s86
    %v163 = vadd.f32 %v158, %v162
    %v164 = vadd.f32 %v159, %v162
    %v165 = vadd.f32 %v160, %v162
    %v166 = vadd.f32 %v161, %v162
    %v167 = vtanh.pop %v163
    %v168 = vtanh.pop %v164
    %v169 = vtanh.pop %v165
    %v170 = vtanh.pop %v166
    %v171 = vstv %s89
    %v172 = vmul.f32 %v171, %v167
    %v173 = vmul.f32 %v171, %v168
    %v174 = vmul.f32 %v171, %v169
    %v175 = vmul.f32 %v171, %v170
    %v176 = vstv %s76
    %v177 = vmul.f32 %v176, %v93
    %v178 = vmul.f32 %v176, %v94
    %v179 = vmul.f32 %v176, %v95
    %v180 = vmul.f32 %v176, %v96
    %v181 = vstv %s77
    %v182 = vmul.f32 %v181, %v99
    %v183 = vmul.f32 %v181, %v100
    %v184 = vmul.f32 %v181, %v101
    %v185 = vmul.f32 %v181, %v102
    %v186 = vadd.f32 %v177, %v182
    %v187 = vadd.f32 %v178, %v183
    %v188 = vadd.f32 %v179, %v184
    %v189 = vadd.f32 %v180, %v185
    %v190 = vstv %s78
    %v191 = vmul.f32 %v190, %v105
    %v192 = vmul.f32 %v190, %v106
    %v193 = vmul.f32 %v190, %v107
    %v194 = vmul.f32 %v190, %v108
    %v195 = vadd.f32 %v186, %v191
    %v196 = vadd.f32 %v187, %v192
    %v197 = vadd.f32 %v188, %v193
    %v198 = vadd.f32 %v189, %v194
    %v199 = vstv %s79
    %v200 = vmul.f32 %v199, %v111
    %v201 = vmul.f32 %v199, %v112
    %v202 = vmul.f32 %v199, %v113
    %v203 = vmul.f32 %v199, %v114
    %v204 = vadd.f32 %v195, %v200
    %v205 = vadd.f32 %v196, %v201
    %v206 = vadd.f32 %v197, %v202
    %v207 = vadd.f32 %v198, %v203
    %v208 = vstv %s80
    %v209 = vmul.f32 %v208, %v117
    %v210 = vmul.f32 %v208, %v118
    %v211 = vmul.f32 %v208, %v119
    %v212 = vmul.f32 %v208, %v120
    %v213 = vadd.f32 %v204, %v209
    %v214 = vadd.f32 %v205, %v210
    %v215 = vadd.f32 %v206, %v211
    %v216 = vadd.f32 %v207, %v212
    %v217 = vstv %s87
    %v218 = vadd.f32 %v213, %v217
    %v219 = vadd.f32 %v214, %v217
    %v220 = vadd.f32 %v215, %v217
    %v221 = vadd.f32 %v216, %v217
    %v222 = vtanh.pop %v218
    %v223 = vtanh.pop %v219
    %v224 = vtanh.pop %v220
    %v225 = vtanh.pop %v221
    %v226 = vstv %s90
    %v227 = vmul.f32 %v226, %v222
    %v228 = vmul.f32 %v226, %v223
    %v229 = vmul.f32 %v226, %v224
    %v230 = vmul.f32 %v226, %v225
    %v231 = vadd.f32 %v172, %v227
    %v232 = vadd.f32 %v173, %v228
    %v233 = vadd.f32 %v174, %v229
    %v234 = vadd.f32 %v175, %v230
    %v235 = vstv %s81
    %v236 = vmul.f32 %v235, %v93
    %v237 = vmul.f32 %v235, %v94
    %v238 = vmul.f32 %v235, %v95
    %v239 = vmul.f32 %v235, %v96
    %v240 = vstv %s82
    %v241 = vmul.f32 %v240, %v99
    %v242 = vmul.f32 %v240, %v100
    %v243 = vmul.f32 %v240, %v101
    %v244 = vmul.f32 %v240, %v102
    %v245 = vadd.f32 %v236, %v241
    %v246 = vadd.f32 %v237, %v242
    %v247 = vadd.f32 %v238, %v243
    %v248 = vadd.f32 %v239, %v244
    %v249 = vstv %s83
    %v250 = vmul.f32 %v249, %v105
    %v251 = vmul.f32 %v249, %v106
    %v252 = vmul.f32 %v249, %v107
    %v253 = vmul.f32 %v249, %v108
    %v254 = vadd.f32 %v245, %v250
    %v255 = vadd.f32 %v246, %v251
    %v256 = vadd.f32 %v247, %v252
    %v257 = vadd.f32 %v248, %v253
    %v258 = vstv %s84
    %v259 = vmul.f32 %v258, %v111
    %v260 = vmul.f32 %v258, %v112
    %v261 = vmul.f32 %v258, %v113
    %v262 = vmul.f32 %v258, %v114
    %v263 = vadd.f32 %v254, %v259
    %v264 = vadd.f32 %v255, %v260
    %v265 = vadd.f32 %v256, %v261
    %v266 = vadd.f32 %v257, %v262
    %v267 = vstv %s85
    %v268 = vmul.f32 %v267, %v117
    %v269 = vmul.f32 %v267, %v118
    %v270 = vmul.f32 %v267, %v119
    %v271 = vmul.f32 %v267, %v120
    %v272 = vadd.f32 %v263, %v268
    %v273 = vadd.f32 %v264, %v269
    %v274 = vadd.f32 %v265, %v270
    %v275 = vadd.f32 %v266, %v271
    %v276 = vstv %s88
    %v277 = vadd.f32 %v272, %v276
    %v278 = vadd.f32 %v273, %v276
    %v279 = vadd.f32 %v274, %v276
    %v280 = vadd.f32 %v275, %v276
    %v281 = vtanh.pop %v277
    %v282 = vtanh.pop %v278
    %v283 = vtanh.pop %v279
    %v284 = vtanh.pop %v280
    %v285 = vstv %s91
    %v286 = vmul.f32 %v285, %v281
    %v287 = vmul.f32 %v285, %v282
    %v288 = vmul.f32 %v285, %v283
    %v289 = vmul.f32 %v285, %v284
    %v290 = vadd.f32 %v231, %v286
    %v291 = vadd.f32 %v232, %v287
    %v292 = vadd.f32 %v233, %v288
    %v293 = vadd.f32 %v234, %v289
    %v294 = vstv %s92
    %v295 = vadd.f32 %v290, %v294
    %v296 = vadd.f32 %v291, %v294
    %v297 = vadd.f32 %v292, %v294
    %v298 = vadd.f32 %v293, %v294
    %v299 = vtanh.pop %v295
    %v300 = vtanh.pop %v296
    %v301 = vtanh.pop %v297
    %v302 = vtanh.pop %v298
    %303 = vst [vmem:[#allocation12] sm:$0xff] %v299
    %304 = vst [vmem:[#allocation12 + $0x8] sm:$0xff] %v300
    %305 = vst [vmem:[#allocation12 + $0x10] sm:$0xff] %v301
    %306 = vst [vmem:[#allocation12 + $0x18] sm:$0xff] %v302
    // Predicated region
    $region38: #{tpu_custom_call.1} parent=1 // pred_check
      _
    $region39: #{tpu_custom_call.1} parent=1 // pred_check_branch
      %308 = sbr.rel (0) target = $region41
    $region40: #{tpu_custom_call.1} parent=1 // pred_region
      %s310 = ssub.s32 512, 512
      %311 = vsyncadd [#allocation5], %s310
      %s312 = sshll.u32 [#allocation12], 4
      %s313 = int_to_ptr.vmem [resolvable:$true] %s312
      %318 = dma.vmem_to_hbm [thread:$0]  %s313, 512, %s5, [#allocation5], 128, 128, 8
    $region41: #{tpu_custom_call.1} parent=1 // pred_fallthru
      _
    // Predicated region
    $region42: #{tpu_custom_call.1} parent=1 // pred_check
      _
    $region43: #{tpu_custom_call.1} parent=1 // pred_check_branch
      %320 = sbr.rel (0) target = $region45
    $region44: #{tpu_custom_call.1} parent=1 // pred_region
      %321 = dma.done [#allocation5], 512
    $region45: #{tpu_custom_call.1} parent=1 // pred_fallthru
      _
    %322 = vsyncpa [#allocation4], 1
    %323 = vsyncpa [#allocation5], 1
    %324 = vsyncpa [#allocation6], 1
    %325 = vsyncpa [#allocation7], 1
    %326 = vsyncpa [#allocation10], 1

</llo_original>
